<compile_context>
chip_gen: v5e
topology: v5e:2x2
jax: 0.10.0
libtpu: 0.0.40
codegen_flags: <defaults>
</compile_context>

<pallas_src>
import functools

import jax
import jax.numpy as jnp
from jax.experimental import pallas as pl
from jax.experimental.pallas import tpu as pltpu


@functools.lru_cache(maxsize=None)
def _print_size_launcher(shape):
    """Builds the zero-traffic side-effect pallas_call for a given input shape.

    The returned callable takes x (left in place in HBM via
    memory_space=pl.ANY, never DMA'd) and produces a tiny int32 vector in SMEM
    holding the static shape dims — an on-device marker / ordering point only.
    """
    dims = tuple(int(d) for d in shape) if len(shape) > 0 else (1,)
    fmt = f"PrintSize: shape={tuple(int(d) for d in shape)}"

    def _kernel(x_hbm_ref, dims_ref):
        # x stays in HBM: no auto-DMA, zero bytes of HBM<->VMEM traffic for x.
        del x_hbm_ref
        pl.debug_print(fmt)
        for i, d in enumerate(dims):
            dims_ref[i] = jnp.int32(d)

    return pl.pallas_call(
        _kernel,
        out_shape=jax.ShapeDtypeStruct((len(dims),), jnp.int32),
        in_specs=[pl.BlockSpec(memory_space=pl.ANY)],
        out_specs=pl.BlockSpec(memory_space=pltpu.MemorySpace.SMEM),
        compiler_params=pltpu.CompilerParams(has_side_effects=True),
    )


def print_size_forward(x):
    """Equivalent of PrintSize.forward: print(x.shape); return x unchanged."""
    # Host-side print (trace-time under jit; per-call in eager mode).
    print(tuple(x.shape))

    if x.size > 0:
        shape_on_device = _print_size_launcher(tuple(x.shape))(x)
        # Tiny (few-us) zero-traffic launch; block so any device-side error
        # surfaces at the call site. Tracers (under jit) skip the block.
        if hasattr(shape_on_device, "block_until_ready"):
            shape_on_device.block_until_ready()

    # Pure identity: returning x directly is exact and moves zero HBM bytes.
    return x


if __name__ == "__main__":
    key = jax.random.PRNGKey(0)
    # Small NCHW-style input consistent with typical conv-net usage.
    x = jax.random.normal(key, (2, 4, 16, 16), dtype=jnp.float32)

    y = print_size_forward(x)
    y = jax.block_until_ready(y)

    assert y.shape == x.shape
    assert y.dtype == x.dtype
    assert bool(jnp.all(y == x))

    # Sanity-check the side-effect kernel itself: it records the static shape.
    dims_dev = _print_size_launcher(tuple(x.shape))(x)
    dims_dev = jax.block_until_ready(dims_dev)
    assert [int(d) for d in dims_dev] == list(x.shape)

    print("KERNEL_OK")
</pallas_src>

<mosaic_0001>
module attributes {stable_mosaic.version = 11 : i64} {
  func.func @_kernel(%arg0: memref<2x4x16x16xf32, #tpu.memory_space<any>>, %arg1: memref<4xi32, #tpu.memory_space<smem>>) attributes {dimension_semantics = [], scalar_prefetch = 0 : i64, scratch_operands = 0 : i64, tpu.core_type = #tpu.core_type<tc>} {
    tpu.log "PrintSize: shape=(2, 4, 16, 16)"
    %c2_i32 = arith.constant 2 : i32
    %c0 = arith.constant 0 : index
    %0 = memref.load %arg1[%c0] : memref<4xi32, #tpu.memory_space<smem>>
    memref.store %c2_i32, %arg1[%c0] : memref<4xi32, #tpu.memory_space<smem>>
    %c4_i32 = arith.constant 4 : i32
    %c1 = arith.constant 1 : index
    %1 = memref.load %arg1[%c1] : memref<4xi32, #tpu.memory_space<smem>>
    memref.store %c4_i32, %arg1[%c1] : memref<4xi32, #tpu.memory_space<smem>>
    %c16_i32 = arith.constant 16 : i32
    %c2 = arith.constant 2 : index
    %2 = memref.load %arg1[%c2] : memref<4xi32, #tpu.memory_space<smem>>
    memref.store %c16_i32, %arg1[%c2] : memref<4xi32, #tpu.memory_space<smem>>
    %c16_i32_0 = arith.constant 16 : i32
    %c3 = arith.constant 3 : index
    %3 = memref.load %arg1[%c3] : memref<4xi32, #tpu.memory_space<smem>>
    memref.store %c16_i32_0, %arg1[%c3] : memref<4xi32, #tpu.memory_space<smem>>
    return
  }
}

</mosaic_0001>

<llo_original>
// kernel: tpu_custom_call.1
$region0: #{tpu_custom_call.1}
  #allocation0 [shape = 'u32[]', space=smem, size = 0x4, offset = 0x4, fixed_abs, tag = 'smem constant byte address 0x4 - core index']
  #allocation1 [shape = 'u32[72,128]{1,0:T(1,128)}', space=vmem, size = 0x9000, scoped, tag = 'internal scratch']
  #allocation4 [shape = 'u32[]', space=smem, size = 0x4, offset = 0, fixed_abs, tag = 'smem constant byte address 0x0 - chip ID']
  %s0 = inlined_call_operand.hbm [shape: f32[2,4,16,16], index: 0, kind: input, shape index: {}]
  %s1 = inlined_call_operand.hbm [shape: s32[4], index: 1, kind: output, shape index: {}]
  %s2 = sld [smem:[#allocation0]]
  $region11: #{tpu_custom_call.1} parent=0
    _
  %s4 = ssub.s32 1, %s2
  %s5 = scalar_select 0, %s4, %s2
  $region1: #{tpu_custom_call.1} parent=0
    #allocation2 [shape = 'u8[512]{0}', space=smem, size = 0x200, scoped, tag = 'output window, operand 0, single buffered']
    #allocation3 [shape = 's32[1]{0}', space=sflag, size = 0x4, scoped, tag = 'scoped memory for tpu_custom_call.1']
    %6 = vsyncpa [#allocation3], 0
    $region2: #{tpu_custom_call.1} parent=1
      #allocation5 [shape = 's32[1024]{0}', space=smem, size = 0x1000, scoped, tag = 'scoped memory for tpu_custom_call.1']
      %s7 = sld [smem:[#allocation4]]
      %8 = sst [smem:[#allocation5]] %s7
    %s9 = scalar_lea.smem [#allocation2], 0
    %10 = sst [smem:[%s9]] 2
    %s11 = scalar_lea.smem [#allocation2], 1
    %12 = sst [smem:[%s11]] 4
    %s13 = scalar_lea.smem [#allocation2], 2
    %14 = sst [smem:[%s13]] 16
    %s15 = scalar_lea.smem [#allocation2], 3
    %16 = sst [smem:[%s15]] 16
    // Predicated region
    $region3: #{tpu_custom_call.1} parent=1 // pred_check
      _
    $region4: #{tpu_custom_call.1} parent=1 // pred_check_branch
      %18 = sbr.rel (0) target = $region6
    $region5: #{tpu_custom_call.1} parent=1 // pred_region
      %20 = vsyncadd [#allocation3], 0
      %s22 = sshll.u32 %s1, 4
      %s23 = int_to_ptr.hbm [resolvable:$true] %s22
      %25 = dma.smem_to_hbm [#allocation2], 16, %s23, [#allocation3]
    $region6: #{tpu_custom_call.1} parent=1 // pred_fallthru
      _
    // Predicated region
    $region7: #{tpu_custom_call.1} parent=1 // pred_check
      _
    $region8: #{tpu_custom_call.1} parent=1 // pred_check_branch
      %27 = sbr.rel (0) target = $region10
    $region9: #{tpu_custom_call.1} parent=1 // pred_region
      %29 = dma.done [#allocation3], 16
    $region10: #{tpu_custom_call.1} parent=1 // pred_fallthru
      _
    %30 = sfence
    %31 = vsyncpa [#allocation3], 1

</llo_original>
